<compile_context>
chip_gen: v7x
topology: tpu7x:2x2x1
jax: 0.10.0
libtpu: 0.0.40
codegen_flags: <defaults>
</compile_context>

<pallas_src>
import jax
import jax.numpy as jnp
from jax import lax
from jax.experimental import pallas as pl
from jax.experimental.pallas import tpu as pltpu

LANES = 128
SUBLANES = 8
CHUNK_ROWS_MAX = 256            # in-kernel working-set chunk (256x128xf32 = 128 KiB)


def _device_kind():
    try:
        return jax.devices()[0].device_kind.lower()
    except Exception:           # pragma: no cover - no device visible
        return ""


def _generation_params():
    """Per-generation (per-input block budget bytes, vmem limit bytes, TC shards)."""
    kind = _device_kind()
    if "v7" in kind or "7x" in kind:
        # v7x: 64 MiB physical VMEM per TC, 2 TensorCores per chip.
        return 6 << 20, 40 << 20, 2
    # v5e / v6e: 128 MiB physical VMEM, 1 TensorCore.  v5e's default scoped
    # VMEM is 16 MiB, so the explicit limit is what unlocks 8 MiB input blocks.
    return 8 << 20, 48 << 20, 1


def _sublane_packing(dtype):
    # Native sublane packing: 8 rows for 4-byte, 16 for 2-byte, 32 for 1-byte dtypes.
    return SUBLANES * max(1, 4 // jnp.dtype(dtype).itemsize)


def _make_kernel(total_rows, block_rows, chunk_rows, blocks_per_shard, need_mask):
    num_chunks = block_rows // chunk_rows
    groups = chunk_rows // SUBLANES

    def kernel(t_ref, o_ref, sum_ref, cnt_ref, acc_sum, acc_cnt):
        b = pl.program_id(1)

        @pl.when(b == 0)
        def _init():
            acc_sum[...] = jnp.zeros_like(acc_sum)
            acc_cnt[...] = jnp.zeros_like(acc_cnt)

        def accumulate(ci, extra_valid=None):
            r0 = pl.multiple_of(ci * chunk_rows, chunk_rows)
            t = t_ref[pl.ds(r0, chunk_rows), :].astype(jnp.float32)
            o = o_ref[pl.ds(r0, chunk_rows), :].astype(jnp.float32)
            valid = t == t                     # not-NaN: single VPU compare
            if extra_valid is not None:
                valid = jnp.logical_and(valid, extra_valid)
            diff = jnp.where(valid, t - o, 0.0)
            cnt = jnp.where(valid, 1.0, 0.0)
            # (chunk_rows,128)->(groups,8,128) is tile-aligned; axis-0 sum is
            # plain vreg-wise VPU adds into the per-(sublane,lane) partials.
            acc_sum[...] += (diff * diff).reshape(groups, SUBLANES, LANES).sum(axis=0)
            acc_cnt[...] += cnt.reshape(groups, SUBLANES, LANES).sum(axis=0)

        if need_mask:
            gb = pl.program_id(0) * blocks_per_shard + b    # global block index
            full = (gb + 1) * block_rows <= total_rows

            @pl.when(full)                                  # fast path: no masking
            def _fast():
                @pl.loop(0, num_chunks)
                def _(ci):
                    accumulate(ci)

            @pl.when(jnp.logical_not(full))                 # boundary / duplicate block
            def _edge():
                rows_left = total_rows - gb * block_rows    # may be <= 0 (duplicate)
                row = lax.broadcasted_iota(jnp.int32, (chunk_rows, LANES), 0)

                @pl.loop(0, num_chunks)
                def _(ci):
                    accumulate(ci, extra_valid=row < rows_left - ci * chunk_rows)
        else:
            @pl.loop(0, num_chunks)
            def _(ci):
                accumulate(ci)

        @pl.when(b == blocks_per_shard - 1)
        def _writeback():
            sum_ref[...] = acc_sum[...].reshape(sum_ref.shape)
            cnt_ref[...] = acc_cnt[...].reshape(cnt_ref.shape)

    return kernel


def _pallas_partial_sums(t2, o2, block_budget, vmem_limit, num_shards):
    """NaN-masked (sum of squared diffs, valid count) over a (rows, 128) pair."""
    rows = t2.shape[0]
    it_total = t2.dtype.itemsize + o2.dtype.itemsize
    packing = max(_sublane_packing(t2.dtype), _sublane_packing(o2.dtype))

    # Per-input streaming block: as big as the per-generation VMEM budget allows
    # (block_budget per input; x2 inputs x2 pipeline buffers total).
    target_rows = max(packing, (2 * block_budget) // (LANES * it_total))
    block_rows = min(target_rows, rows)
    if block_rows >= CHUNK_ROWS_MAX:
        block_rows = (block_rows // CHUNK_ROWS_MAX) * CHUNK_ROWS_MAX
        chunk_rows = CHUNK_ROWS_MAX
    else:
        block_rows = max(packing, (block_rows // packing) * packing)
        chunk_rows = block_rows

    num_blocks = pl.cdiv(rows, block_rows)
    shards = max(1, min(num_shards, num_blocks))
    blocks_per_shard = pl.cdiv(num_blocks, shards)
    need_mask = shards * blocks_per_shard * block_rows != rows

    if shards * blocks_per_shard > num_blocks:
        def in_map(c, b):        # clamp duplicate trailing blocks of the last shard
            return (jnp.minimum(c * blocks_per_shard + b, num_blocks - 1), 0)
    else:
        def in_map(c, b):
            return (c * blocks_per_shard + b, 0)

    kernel = _make_kernel(rows, block_rows, chunk_rows, blocks_per_shard, need_mask)
    part = jax.ShapeDtypeStruct((shards, SUBLANES, LANES), jnp.float32)

    sums, cnts = pl.pallas_call(
        kernel,
        out_shape=(part, part),
        grid_spec=pltpu.PrefetchScalarGridSpec(
            num_scalar_prefetch=0,
            grid=(shards, blocks_per_shard),
            in_specs=[
                pl.BlockSpec((block_rows, LANES), in_map),
                pl.BlockSpec((block_rows, LANES), in_map),
            ],
            out_specs=[
                pl.BlockSpec((1, SUBLANES, LANES), lambda c, b: (c, 0, 0)),
                pl.BlockSpec((1, SUBLANES, LANES), lambda c, b: (c, 0, 0)),
            ],
            scratch_shapes=[
                pltpu.VMEM((SUBLANES, LANES), jnp.float32),   # sum of squared errors
                pltpu.VMEM((SUBLANES, LANES), jnp.float32),   # count of valid entries
            ],
        ),
        compiler_params=pltpu.CompilerParams(
            dimension_semantics=("parallel", "arbitrary"),
            vmem_limit_bytes=vmem_limit,
        ),
        cost_estimate=pl.CostEstimate(
            flops=7 * rows * LANES,
            transcendentals=0,
            bytes_accessed=rows * LANES * it_total + 2 * shards * SUBLANES * LANES * 4,
        ),
    )(t2, o2)
    return jnp.sum(sums), jnp.sum(cnts)


def _jax_sums(t, o):
    t = t.astype(jnp.float32)
    o = o.astype(jnp.float32)
    valid = t == t
    diff = jnp.where(valid, t - o, 0.0)
    return jnp.sum(diff * diff), jnp.sum(jnp.where(valid, 1.0, 0.0))


@jax.jit
def _rmse_impl(target, output):
    t = jnp.ravel(target)        # native dtype; cast happens on the VPU in-kernel
    o = jnp.ravel(output)
    n = t.shape[0]

    block_budget, vmem_limit, num_shards = _generation_params()
    packing = max(_sublane_packing(t.dtype), _sublane_packing(o.dtype))

    if n < packing * LANES:      # below one native tile: plain JAX is enough
        s, c = _jax_sums(t, o)
        return s / c             # 0/0 -> NaN matches torch.mean of an empty tensor

    n_main = (n // LANES) * LANES
    rows = n_main // LANES

    if n_main == n:
        t2 = t.reshape(rows, LANES)     # pure view, no HBM copy
        o2 = o.reshape(rows, LANES)
        s, c = _pallas_partial_sums(t2, o2, block_budget, vmem_limit, num_shards)
        return s / c

    # Lane-unaligned size: kernel over the aligned prefix, <128-element tail in
    # plain JAX, partials combined before the final divide (no NaN-padding pass).
    # TODO(synk): the prefix slice still materializes one copy of each input; a
    # rank-1 manual-DMA kernel could stream unaligned arrays with zero copies.
    t2 = t[:n_main].reshape(rows, LANES)
    o2 = o[:n_main].reshape(rows, LANES)
    s, c = _pallas_partial_sums(t2, o2, block_budget, vmem_limit, num_shards)
    ts, tc = _jax_sums(t[n_main:], o[n_main:])
    return (s + ts) / (c + tc)


def downscaling_rmse_loss(target, output, prev_step=None, fix_sigma=None,
                          expand=True):
    """JAX/Pallas equivalent of DownscalingRmseLoss.forward.

    prev_step / fix_sigma / expand are accepted for signature parity but are
    unused, exactly as in the PyTorch forward (which returns the NaN-masked MSE).
    """
    del prev_step, fix_sigma, expand
    return _rmse_impl(target, output)


def _reference(target, output):
    t = jnp.ravel(target).astype(jnp.float32)
    o = jnp.ravel(output).astype(jnp.float32)
    valid = jnp.logical_not(jnp.isnan(t))
    diff = jnp.where(valid, t - o, 0.0)
    return jnp.sum(diff * diff) / jnp.sum(valid.astype(jnp.float32))


if __name__ == "__main__":
    key = jax.random.PRNGKey(0)
    k1, k2, k3, k4 = jax.random.split(key, 4)

    shape = (2, 4, 16, 16)        # (batch, channels, H, W)
    target = jax.random.normal(k1, shape, dtype=jnp.float32)
    output = jax.random.normal(k2, shape, dtype=jnp.float32)
    prev_step = jax.random.normal(k4, shape, dtype=jnp.float32)   # unused, parity
    target = jnp.where(jax.random.bernoulli(k3, 0.1, shape), jnp.nan, target)

    loss = jax.block_until_ready(downscaling_rmse_loss(target, output, prev_step))
    ref = _reference(target, output)
    assert jnp.allclose(loss, ref, rtol=1e-5, atol=1e-6), (loss, ref)

    # Extra coverage: partial final row-block, lane-unaligned size (prefix +
    # JAX tail), tiny pure-JAX fallback, and the bf16 (16-row packing) path.
    cases = [
        ((2, 5, 128), jnp.float32, 1),
        ((3, 5, 7, 11), jnp.float32, 2),
        ((4, 7, 5), jnp.float32, 3),
        ((2, 4, 16, 16), jnp.bfloat16, 4),
    ]
    for extra_shape, dt, seed in cases:
        kk = jax.random.split(jax.random.PRNGKey(seed), 3)
        tgt = jax.random.normal(kk[0], extra_shape, dtype=dt)
        out_ = jax.random.normal(kk[1], extra_shape, dtype=dt)
        tgt = jnp.where(jax.random.bernoulli(kk[2], 0.1, extra_shape),
                        jnp.array(jnp.nan, dtype=dt), tgt)
        got = jax.block_until_ready(downscaling_rmse_loss(tgt, out_))
        want = _reference(tgt, out_)
        assert jnp.allclose(got, want, rtol=1e-5, atol=1e-6), (extra_shape, got, want)

    # Force the multi-shard ("parallel" axis) + clamped-duplicate-block path
    # with a tiny per-input block budget, regardless of the local chip type.
    kk = jax.random.split(jax.random.PRNGKey(5), 3)
    t2 = jax.random.normal(kk[0], (40, 128), dtype=jnp.float32)
    o2 = jax.random.normal(kk[1], (40, 128), dtype=jnp.float32)
    t2 = jnp.where(jax.random.bernoulli(kk[2], 0.1, (40, 128)), jnp.nan, t2)
    s, c = _pallas_partial_sums(t2, o2, block_budget=8 << 10,
                                vmem_limit=32 << 20, num_shards=2)
    got = jax.block_until_ready(s / c)
    want = _reference(t2, o2)
    assert jnp.allclose(got, want, rtol=1e-5, atol=1e-6), (got, want)

    print("KERNEL_OK")
</pallas_src>

<mosaic_0001>
module attributes {stable_mosaic.version = 11 : i64} {
  func.func @kernel(%arg0: i32, %arg1: i32, %arg2: memref<16x128xf32, #tpu.memory_space<vmem>>, %arg3: memref<16x128xf32, #tpu.memory_space<vmem>>, %arg4: memref<1x8x128xf32, #tpu.memory_space<vmem>>, %arg5: memref<1x8x128xf32, #tpu.memory_space<vmem>>, %arg6: memref<8x128xf32, #tpu.memory_space<vmem>>, %arg7: memref<8x128xf32, #tpu.memory_space<vmem>>) attributes {dimension_semantics = [#tpu.dimension_semantics<parallel>, #tpu.dimension_semantics<arbitrary>], iteration_bounds = array<i64: 1, 1>, scalar_prefetch = 0 : i64, scratch_operands = 2 : i64, tpu.core_type = #tpu.core_type<tc>, window_params = [{transform_indices = @transform_0, window_bounds = array<i64: 16, 128>}, {transform_indices = @transform_1, window_bounds = array<i64: 16, 128>}, {transform_indices = @transform_2, window_bounds = array<i64: 1, 8, 128>}, {transform_indices = @transform_3, window_bounds = array<i64: 1, 8, 128>}]} {
    %c0_i32 = arith.constant 0 : i32
    %0 = arith.cmpi eq, %arg1, %c0_i32 : i32
    %1 = arith.extui %0 : i1 to i32
    %c0_i32_0 = arith.constant 0 : i32
    %2 = arith.cmpi ne, %1, %c0_i32_0 : i32
    scf.if %2 {
      %cst_19 = arith.constant 0.000000e+00 : f32
      %32 = vector.broadcast %cst_19 : f32 to vector<8x128xf32>
      %c0_20 = arith.constant 0 : index
      %c0_21 = arith.constant 0 : index
      %33 = vector.load %arg6[%c0_20, %c0_21] : memref<8x128xf32, #tpu.memory_space<vmem>>, vector<8x128xf32>
      tpu.vector_store %arg6[%c0_20, %c0_21], %32 {strides = array<i32>} : memref<8x128xf32, #tpu.memory_space<vmem>>, vector<8x128xf32>,
      %cst_22 = arith.constant 0.000000e+00 : f32
      %34 = vector.broadcast %cst_22 : f32 to vector<8x128xf32>
      %c0_23 = arith.constant 0 : index
      %c0_24 = arith.constant 0 : index
      %35 = vector.load %arg7[%c0_23, %c0_24] : memref<8x128xf32, #tpu.memory_space<vmem>>, vector<8x128xf32>
      tpu.vector_store %arg7[%c0_23, %c0_24], %34 {strides = array<i32>} : memref<8x128xf32, #tpu.memory_space<vmem>>, vector<8x128xf32>,
    } else {
    }
    %c0_i32_1 = arith.constant 0 : i32
    %c1_i32 = arith.constant 1 : i32
    %3 = arith.muli %c0_i32_1, %c1_i32 : i32
    %c0_i32_2 = arith.constant 0 : i32
    %4 = arith.addi %c0_i32_2, %3 : i32
    %c16_i32 = arith.constant 16 : i32
    %5 = arith.muli %4, %c16_i32 : i32
    %6 = tpu.assume_multiple %5, 16 : i32
    %7 = arith.index_cast %6 : i32 to index
    %c0 = arith.constant 0 : index
    %8 = vector.load %arg2[%7, %c0] : memref<16x128xf32, #tpu.memory_space<vmem>>, vector<16x128xf32>
    %9 = arith.index_cast %6 : i32 to index
    %c0_3 = arith.constant 0 : index
    %10 = vector.load %arg3[%9, %c0_3] : memref<16x128xf32, #tpu.memory_space<vmem>>, vector<16x128xf32>
    %11 = arith.cmpf oeq, %8, %8 : vector<16x128xf32>
    %12 = arith.subf %8, %10 : vector<16x128xf32>
    %cst = arith.constant 0.000000e+00 : f32
    %13 = vector.broadcast %cst : f32 to vector<16x128xf32>
    %14 = arith.select %11, %12, %13 : vector<16x128xi1>, vector<16x128xf32>
    %cst_4 = arith.constant 1.000000e+00 : f32
    %cst_5 = arith.constant 0.000000e+00 : f32
    %15 = vector.broadcast %cst_4 : f32 to vector<16x128xf32>
    %16 = vector.broadcast %cst_5 : f32 to vector<16x128xf32>
    %17 = arith.select %11, %15, %16 : vector<16x128xi1>, vector<16x128xf32>
    %c0_6 = arith.constant 0 : index
    %c0_7 = arith.constant 0 : index
    %18 = vector.load %arg6[%c0_6, %c0_7] : memref<8x128xf32, #tpu.memory_space<vmem>>, vector<8x128xf32>
    %19 = arith.mulf %14, %14 : vector<16x128xf32>
    %20 = vector.shape_cast %19 : vector<16x128xf32> to vector<2x8x128xf32>
    %cst_8 = arith.constant dense<0.000000e+00> : vector<8x128xf32>
    %21 = vector.multi_reduction <add>, %20, %cst_8 [0] : vector<2x8x128xf32> to vector<8x128xf32>
    %22 = arith.addf %18, %21 : vector<8x128xf32>
    %c0_9 = arith.constant 0 : index
    %c0_10 = arith.constant 0 : index
    %23 = vector.load %arg6[%c0_9, %c0_10] : memref<8x128xf32, #tpu.memory_space<vmem>>, vector<8x128xf32>
    tpu.vector_store %arg6[%c0_9, %c0_10], %22 {strides = array<i32>} : memref<8x128xf32, #tpu.memory_space<vmem>>, vector<8x128xf32>,
    %c0_11 = arith.constant 0 : index
    %c0_12 = arith.constant 0 : index
    %24 = vector.load %arg7[%c0_11, %c0_12] : memref<8x128xf32, #tpu.memory_space<vmem>>, vector<8x128xf32>
    %25 = vector.shape_cast %17 : vector<16x128xf32> to vector<2x8x128xf32>
    %cst_13 = arith.constant dense<0.000000e+00> : vector<8x128xf32>
    %26 = vector.multi_reduction <add>, %25, %cst_13 [0] : vector<2x8x128xf32> to vector<8x128xf32>
    %27 = arith.addf %24, %26 : vector<8x128xf32>
    %c0_14 = arith.constant 0 : index
    %c0_15 = arith.constant 0 : index
    %28 = vector.load %arg7[%c0_14, %c0_15] : memref<8x128xf32, #tpu.memory_space<vmem>>, vector<8x128xf32>
    tpu.vector_store %arg7[%c0_14, %c0_15], %27 {strides = array<i32>} : memref<8x128xf32, #tpu.memory_space<vmem>>, vector<8x128xf32>,
    %c1_i32_16 = arith.constant 1 : i32
    %c0_i32_17 = arith.constant 0 : i32
    %29 = arith.cmpi eq, %arg1, %c0_i32_17 : i32
    %30 = arith.extui %29 : i1 to i32
    %c0_i32_18 = arith.constant 0 : i32
    %31 = arith.cmpi ne, %30, %c0_i32_18 : i32
    scf.if %31 {
      %c0_19 = arith.constant 0 : index
      %c0_20 = arith.constant 0 : index
      %32 = vector.load %arg6[%c0_19, %c0_20] : memref<8x128xf32, #tpu.memory_space<vmem>>, vector<8x128xf32>
      %33 = vector.shape_cast %32 : vector<8x128xf32> to vector<1x8x128xf32>
      %c0_21 = arith.constant 0 : index
      %c0_22 = arith.constant 0 : index
      %c0_23 = arith.constant 0 : index
      %34 = vector.load %arg4[%c0_21, %c0_22, %c0_23] : memref<1x8x128xf32, #tpu.memory_space<vmem>>, vector<1x8x128xf32>
      tpu.vector_store %arg4[%c0_21, %c0_22, %c0_23], %33 {strides = array<i32>} : memref<1x8x128xf32, #tpu.memory_space<vmem>>, vector<1x8x128xf32>,
      %c0_24 = arith.constant 0 : index
      %c0_25 = arith.constant 0 : index
      %35 = vector.load %arg7[%c0_24, %c0_25] : memref<8x128xf32, #tpu.memory_space<vmem>>, vector<8x128xf32>
      %36 = vector.shape_cast %35 : vector<8x128xf32> to vector<1x8x128xf32>
      %c0_26 = arith.constant 0 : index
      %c0_27 = arith.constant 0 : index
      %c0_28 = arith.constant 0 : index
      %37 = vector.load %arg5[%c0_26, %c0_27, %c0_28] : memref<1x8x128xf32, #tpu.memory_space<vmem>>, vector<1x8x128xf32>
      tpu.vector_store %arg5[%c0_26, %c0_27, %c0_28], %36 {strides = array<i32>} : memref<1x8x128xf32, #tpu.memory_space<vmem>>, vector<1x8x128xf32>,
    } else {
    }
    return
  }
  func.func @transform_0(%arg0: i32, %arg1: i32) -> (i32, i32) {
    %c1_i32 = arith.constant 1 : i32
    %0 = arith.muli %arg0, %c1_i32 : i32
    %1 = arith.addi %0, %arg1 : i32
    %c0_i32 = arith.constant 0 : i32
    %c0_i32_0 = arith.constant 0 : i32
    return %1, %c0_i32 : i32, i32
  }
  func.func @transform_1(%arg0: i32, %arg1: i32) -> (i32, i32) {
    %c1_i32 = arith.constant 1 : i32
    %0 = arith.muli %arg0, %c1_i32 : i32
    %1 = arith.addi %0, %arg1 : i32
    %c0_i32 = arith.constant 0 : i32
    %c0_i32_0 = arith.constant 0 : i32
    return %1, %c0_i32 : i32, i32
  }
  func.func @transform_2(%arg0: i32, %arg1: i32) -> (i32, i32, i32) {
    %c0_i32 = arith.constant 0 : i32
    %c0_i32_0 = arith.constant 0 : i32
    %c0_i32_1 = arith.constant 0 : i32
    return %arg0, %c0_i32, %c0_i32_0 : i32, i32, i32
  }
  func.func @transform_3(%arg0: i32, %arg1: i32) -> (i32, i32, i32) {
    %c0_i32 = arith.constant 0 : i32
    %c0_i32_0 = arith.constant 0 : i32
    %c0_i32_1 = arith.constant 0 : i32
    return %arg0, %c0_i32, %c0_i32_0 : i32, i32, i32
  }
}

</mosaic_0001>

<llo_original>
// kernel: _rmse_impl.1
$region0: #{_rmse_impl.1}
  #allocation0 [shape = 'u32[]', space=smem, size = 0x4, offset = 0x4, fixed_abs, tag = 'smem constant byte address 0x4 - core index']
  #allocation1 [shape = 'u32[144,128]{1,0:T(1,128)}', space=vmem, size = 0x12000, scoped, tag = 'internal scratch']
  #allocation2 [shape = 'f32[8,128]{1,0:T(8,128)}', space=vmem, size = 0x1000, scoped, tag = 'scratch operand']
  #allocation3 [shape = 'f32[8,128]{1,0:T(8,128)}', space=vmem, size = 0x1000, scoped, tag = 'scratch operand']
  %s0 = inlined_call_operand.vmem [shape: f32[16,128], index: 0, kind: input, shape index: {}]
  %s1 = inlined_call_operand.vmem [shape: f32[16,128], index: 1, kind: input, shape index: {}]
  %s2 = inlined_call_operand.vmem [shape: f32[1,8,128], index: 2, kind: output, shape index: {0}]
  %s3 = inlined_call_operand.vmem [shape: f32[1,8,128], index: 3, kind: output, shape index: {1}]
  %4 = xla_tuple %s2, %s3
  %s5 = sld [smem:[#allocation0]]
  $region34: #{_rmse_impl.1} parent=0
    _
  %s7 = ssub.s32 1, %s5
  %s8 = scalar_select 0, %s7, %s5
  // Predicated region
  $region2: #{_rmse_impl.1} parent=0 // pred_check
    _
  $region3: #{_rmse_impl.1} parent=0 // pred_check_branch
    %10 = sbr.rel (0) target = $region5
  $region4: #{_rmse_impl.1} parent=0 // pred_region
    %s11 = sadd.s32 0, 0
    %s12 = smul.u32 2, %s11
    %p13 = scmp.lt.s32.totalorder %s12, 1
    %s14 = scalar_select %p13, %s12, 1
    %s15 = smul.addr %s14, 8
    %s16 = scalar_lea.vmem %s0, %s15
    %s17 = sadd.s32 0, 0
    %s18 = smul.u32 2, %s17
  $region5: #{_rmse_impl.1} parent=0 // pred_fallthru
    _
  // Predicated region
  $region6: #{_rmse_impl.1} parent=0 // pred_check
    _
  $region7: #{_rmse_impl.1} parent=0 // pred_check_branch
    %20 = sbr.rel (0) target = $region9
  $region8: #{_rmse_impl.1} parent=0 // pred_region
    %s21 = sadd.s32 0, 0
    %s22 = smul.u32 2, %s21
    %p23 = scmp.lt.s32.totalorder %s22, 1
    %s24 = scalar_select %p23, %s22, 1
    %s25 = smul.addr %s24, 8
    %s26 = scalar_lea.vmem %s1, %s25
    %s27 = sadd.s32 0, 0
    %s28 = smul.u32 2, %s27
  $region9: #{_rmse_impl.1} parent=0 // pred_fallthru
    _
  %s29 = sadd.s32 0, 0
  %s30 = smul.u32 2, %s29
  %p31 = scmp.lt.s32.totalorder %s30, 1
  %s32 = scalar_select %p31, %s30, 1
  %s33 = smul.addr %s32, 8
  %s34 = scalar_lea.vmem %s0, %s33
  %s35 = sadd.s32 0, 0
  %s36 = smul.u32 2, %s35
  %p37 = scmp.lt.s32.totalorder %s36, 1
  %s38 = scalar_select %p37, %s36, 1
  %s39 = smul.addr %s38, 8
  %s40 = scalar_lea.vmem %s1, %s39
  %s41 = sadd.s32 0, 0
  %s42 = smul.u32 2, %s41
  %p43 = scmp.lt.s32.totalorder %s42, 1
  %s44 = scalar_select %p43, %s42, 1
  %s45 = smul.addr %s44, 8
  %s46 = scalar_lea.vmem %s0, %s45
  %s47 = sadd.s32 0, 0
  %s48 = smul.u32 2, %s47
  %s49 = sadd.s32 0, 0
  %s50 = smul.u32 2, %s49
  %p51 = scmp.lt.s32.totalorder %s50, 1
  %s52 = scalar_select %p51, %s50, 1
  %s53 = smul.addr %s52, 8
  %s54 = scalar_lea.vmem %s1, %s53
  %s55 = sadd.s32 0, 0
  %s56 = smul.u32 2, %s55
  %p57 = scmp.eq.s32.totalorder 0, 0
  // Predicated region
  $region10: #{_rmse_impl.1} parent=0 // pred_check
    %p58 = pneg %p57
  $region11: #{_rmse_impl.1} parent=0 // pred_check_branch
    %60 = sbr.rel (%p58) target = $region13
  $region12: #{_rmse_impl.1} parent=0 // pred_region
    %61 = vst [vmem:[#allocation2] sm:$0xff] 0.0
    %62 = vst [vmem:[#allocation3] sm:$0xff] 0.0
  $region13: #{_rmse_impl.1} parent=0 // pred_fallthru
    _
  %v63 = vld [vmem:[%s46] sm:$0xff]
  %v64 = vld [vmem:[%s46 + $0x8] sm:$0xff]
  %v65 = vld [vmem:[%s54] sm:$0xff]
  %v66 = vld [vmem:[%s54 + $0x8] sm:$0xff]
  %vm67 = vcmp.eq.f32.partialorder %v63, %v63
  %vm68 = vcmp.eq.f32.partialorder %v64, %v64
  %v69 = vsub.f32 %v63, %v65
  %v70 = vsub.f32 %v64, %v66
  %v71 = vsel %vm67, %v69, 0.0
  %v72 = vsel %vm68, %v70, 0.0
  %v73 = vsel %vm67, 1.0, 0.0
  %v74 = vsel %vm68, 1.0, 0.0
  %v75 = vld [vmem:[#allocation2] sm:$0xff]
  %v76 = vmul.f32 %v71, %v71
  %v77 = vmul.f32 %v72, %v72
  %v78 = vadd.f32 %v76, %v77
  %v79 = vadd.f32 %v75, %v78
  %80 = vst [vmem:[#allocation2] sm:$0xff] %v79
  %v81 = vld [vmem:[#allocation3] sm:$0xff]
  %v82 = vadd.f32 %v73, %v74
  %v83 = vadd.f32 %v81, %v82
  %84 = vst [vmem:[#allocation3] sm:$0xff] %v83
  // Predicated region
  $region14: #{_rmse_impl.1} parent=0 // pred_check
    %p85 = pneg %p57
  $region15: #{_rmse_impl.1} parent=0 // pred_check_branch
    %87 = sbr.rel (%p85) target = $region17
  $region16: #{_rmse_impl.1} parent=0 // pred_region
    %v88 = vld [vmem:[#allocation2] sm:$0xff]
    %89 = vst [vmem:[%s2] sm:$0xff] %v88
    %v90 = vld [vmem:[#allocation3] sm:$0xff]
    %91 = vst [vmem:[%s3] sm:$0xff] %v90
  $region17: #{_rmse_impl.1} parent=0 // pred_fallthru
    _
  // Predicated region
  $region18: #{_rmse_impl.1} parent=0 // pred_check
    _
  $region19: #{_rmse_impl.1} parent=0 // pred_check_branch
    %93 = sbr.rel (0) target = $region21
  $region20: #{_rmse_impl.1} parent=0 // pred_region
    _
  $region21: #{_rmse_impl.1} parent=0 // pred_fallthru
    _
  // Predicated region
  $region22: #{_rmse_impl.1} parent=0 // pred_check
    _
  $region23: #{_rmse_impl.1} parent=0 // pred_check_branch
    %95 = sbr.rel (0) target = $region25
  $region24: #{_rmse_impl.1} parent=0 // pred_region
    _
  $region25: #{_rmse_impl.1} parent=0 // pred_fallthru
    _
  // Predicated region
  $region26: #{_rmse_impl.1} parent=0 // pred_check
    _
  $region27: #{_rmse_impl.1} parent=0 // pred_check_branch
    %97 = sbr.rel (0) target = $region29
  $region28: #{_rmse_impl.1} parent=0 // pred_region
    _
  $region29: #{_rmse_impl.1} parent=0 // pred_fallthru
    _
  // Predicated region
  $region30: #{_rmse_impl.1} parent=0 // pred_check
    _
  $region31: #{_rmse_impl.1} parent=0 // pred_check_branch
    %99 = sbr.rel (0) target = $region33
  $region32: #{_rmse_impl.1} parent=0 // pred_region
    _
  $region33: #{_rmse_impl.1} parent=0 // pred_fallthru
    _

</llo_original>
